<compile_context>
chip_gen: v7x
topology: tpu7x:2x2x1
jax: 0.10.0
libtpu: 0.0.40
codegen_flags: <defaults>
</compile_context>

<pallas_src>
import functools

import jax
import jax.numpy as jnp
from jax import lax
from jax.experimental import pallas as pl
from jax.experimental.pallas import tpu as pltpu


LANE = 128
ACC_ROWS = 256                 # fixed f32 accumulator: 256*128*4 B = 128 KiB
ROW_TILE = 4096                # rows per grid block: 2 MiB per f32 input block
NUM_SPLITS = 2                 # max TensorCores per chip (v7x); harmless on 1-TC chips
VMEM_LIMIT_BYTES = 32 * 1024 * 1024


def _sublane_pack(dtype) -> int:
    """Native sublane packing: 8 for 4-byte, 16 for 2-byte, 32 for 1-byte dtypes."""
    itemsize = jnp.dtype(dtype).itemsize
    return max(8, 32 // max(1, itemsize))


def _sse_kernel(x_ref, y_ref, o_ref, acc_ref, *,
                rows, block_rows, acc_rows, steps_per_split, needs_mask):
    """Per-split sum of squared differences.

    Grid = (split, step). The split axis is "parallel" (sharded across TensorCores on
    v7x); the step axis is the sequential reduction.  acc_ref is a fixed small f32
    accumulator; each (block_rows, 128) block is folded in via an unrolled sub-chunk
    loop.  Ragged / overhang blocks are masked with a select against the valid row
    count (garbage rows may be NaN/Inf, so never mask by multiplication).
    """
    c = pl.program_id(0)            # split index ("parallel")
    i = pl.program_id(1)            # reduction step within this split ("arbitrary")
    last = pl.num_programs(1) - 1

    @pl.when(i == 0)
    def _init():
        acc_ref[...] = jnp.zeros_like(acc_ref)

    n_sub = block_rows // acc_rows  # static

    if needs_mask:
        gi = c * steps_per_split + i                       # global (unclamped) block idx
        valid = jnp.clip(rows - gi * block_rows, 0, block_rows)
        base_iota = lax.broadcasted_iota(jnp.int32, (acc_rows, LANE), 0)

    for s in range(n_sub):          # static unrolled fold into the small accumulator
        lo = s * acc_rows
        if n_sub == 1:
            xs, ys = x_ref[...], y_ref[...]
        else:
            xs = x_ref[lo:lo + acc_rows, :]
            ys = y_ref[lo:lo + acc_rows, :]
        # Upcast BEFORE the subtract: bf16 cancellation of nearly-equal pixels loses
        # exactly the bits that matter; the kernel is HBM-bound so the cast is free.
        d = xs.astype(jnp.float32) - ys.astype(jnp.float32)
        if needs_mask:
            d = jnp.where((base_iota + lo) < valid, d, jnp.float32(0.0))
        acc_ref[...] += d * d

    @pl.when(i == last)
    def _finalize():
        o_ref[0, 0] = jnp.sum(acc_ref[...])


@functools.partial(jax.jit, static_argnames=("theta", "row_tile"))
def recons_loss(images, reconstructions, *, theta: float, row_tile: int = ROW_TILE):
    """theta * MSELoss(reduction='sum')(reconstructions.view(images.shape), images)."""
    # Matches reconstructions.contiguous().view(images.shape).
    recon = jnp.reshape(reconstructions, images.shape)

    x = jnp.ravel(images)
    y = jnp.ravel(recon)
    n = x.shape[0]

    # Zero-copy main path: the first n - (n % 128) elements reshape (for free) into a
    # lane-dense (rows, 128) slab; the < 128-element remainder (if any) is summed in
    # plain JAX.  No jnp.pad of the full operands (that would add a full HBM read+write
    # of both arrays before the kernel even starts).
    n_main = (n // LANE) * LANE
    rem = n - n_main

    tail = jnp.float32(0.0)
    if rem:
        xt = x[n_main:].astype(jnp.float32)
        yt = y[n_main:].astype(jnp.float32)
        tail = jnp.sum((xt - yt) * (xt - yt))
        x = x[:n_main]
        y = y[:n_main]

    if n_main == 0:
        return jnp.float32(theta) * tail

    rows = n_main // LANE
    x2 = x.reshape(rows, LANE)
    y2 = y.reshape(rows, LANE)

    # dtype-packing-aware block rounding (8 rows for f32, 16 for bf16, 32 for int8/fp8).
    pack = max(_sublane_pack(x2.dtype), _sublane_pack(y2.dtype))
    tile = max(pack, ((row_tile + pack - 1) // pack) * pack)

    if rows > tile:
        block_rows = tile           # multiple of the packing
    else:
        block_rows = rows           # full-dim block (exempt from the (8,128) rule)
    acc_rows = ACC_ROWS if block_rows % ACC_ROWS == 0 else block_rows

    n_blocks = pl.cdiv(rows, block_rows)
    num_splits = min(NUM_SPLITS, n_blocks)
    steps_per_split = pl.cdiv(n_blocks, num_splits)
    overhang = num_splits * steps_per_split != n_blocks
    needs_mask = (rows % block_rows != 0) or overhang

    if overhang:
        # Clamp so no block start is ever out of bounds; the duplicate block's
        # contribution is masked to zero inside the kernel.
        in_index_map = lambda c, i: (jnp.minimum(c * steps_per_split + i, n_blocks - 1), 0)
    else:
        in_index_map = lambda c, i: (c * steps_per_split + i, 0)

    kernel = functools.partial(
        _sse_kernel, rows=rows, block_rows=block_rows, acc_rows=acc_rows,
        steps_per_split=steps_per_split, needs_mask=needs_mask)

    bytes_accessed = rows * LANE * (x2.dtype.itemsize + y2.dtype.itemsize)

    partials = pl.pallas_call(
        kernel,
        out_shape=jax.ShapeDtypeStruct((num_splits, 1), jnp.float32),
        grid=(num_splits, steps_per_split),
        in_specs=[
            pl.BlockSpec((block_rows, LANE), in_index_map),
            pl.BlockSpec((block_rows, LANE), in_index_map),
        ],
        out_specs=pl.BlockSpec((1, 1), lambda c, i: (c, 0), memory_space=pltpu.SMEM),
        scratch_shapes=[pltpu.VMEM((acc_rows, LANE), jnp.float32)],
        compiler_params=pltpu.CompilerParams(
            dimension_semantics=("parallel", "arbitrary"),
            vmem_limit_bytes=VMEM_LIMIT_BYTES,
        ),
        cost_estimate=pl.CostEstimate(
            flops=3 * rows * LANE, transcendentals=0, bytes_accessed=bytes_accessed),
    )(x2, y2)

    sse = jnp.sum(partials) + tail
    return jnp.float32(theta) * sse


def _reference(images, reconstructions, theta):
    recon = jnp.reshape(reconstructions, images.shape)
    return jnp.float32(theta) * jnp.sum(
        (recon.astype(jnp.float32) - images.astype(jnp.float32)) ** 2
    )


if __name__ == "__main__":
    key = jax.random.PRNGKey(0)
    theta = 0.0005  # typical reconstruction-loss weight (module ctor arg)
    k1, k2, k3, k4, k5, k6, k7, k8, k9, k10 = jax.random.split(key, 10)

    # Case 1: module-consistent shapes — NCHW images, flattened decoder output.
    images = jax.random.normal(k1, (2, 4, 16, 16), dtype=jnp.float32)
    recons = jax.random.normal(k2, (2, 4 * 16 * 16), dtype=jnp.float32)
    loss = recons_loss(images, recons, theta=theta)
    jax.block_until_ready(loss)
    ref = _reference(images, recons, theta)
    assert jnp.allclose(loss, ref, rtol=1e-4, atol=1e-5), (loss, ref)

    # Case 2: ragged multi-block reduction + 2-way split + clamped overhang block.
    images2 = jax.random.normal(k3, (2, 3, 96, 96), dtype=jnp.float32)
    recons2 = jax.random.normal(k4, (2, 3 * 96 * 96), dtype=jnp.float32)
    loss2 = recons_loss(images2, recons2, theta=theta, row_tile=64)
    ref2 = _reference(images2, recons2, theta)
    assert jnp.allclose(loss2, ref2, rtol=1e-4, atol=1e-5), (loss2, ref2)

    # Case 3: element count not a multiple of 128 (plain-JAX tail path, no full pad).
    images3 = jax.random.normal(k5, (2, 3, 7, 7), dtype=jnp.float32)
    recons3 = jax.random.normal(k6, (2, 3 * 7 * 7), dtype=jnp.float32)
    loss3 = recons_loss(images3, recons3, theta=theta)
    ref3 = _reference(images3, recons3, theta)
    assert jnp.allclose(loss3, ref3, rtol=1e-4, atol=1e-5), (loss3, ref3)

    # Case 4: sub-chunk accumulator fold (block_rows > acc_rows) + ragged 2-way split.
    images4 = jax.random.normal(k7, (2, 4, 96, 96), dtype=jnp.float32)
    recons4 = jax.random.normal(k8, (2, 4 * 96 * 96), dtype=jnp.float32)
    loss4 = recons_loss(images4, recons4, theta=theta, row_tile=512)
    ref4 = _reference(images4, recons4, theta)
    assert jnp.allclose(loss4, ref4, rtol=1e-4, atol=1e-5), (loss4, ref4)

    # Case 5: bf16 inputs (upcast-before-subtract path, 16-row sublane packing).
    images5 = jax.random.normal(k9, (2, 4, 16, 16), dtype=jnp.bfloat16)
    recons5 = jax.random.normal(k10, (2, 4 * 16 * 16), dtype=jnp.bfloat16)
    loss5 = recons_loss(images5, recons5, theta=theta)
    ref5 = _reference(images5, recons5, theta)
    assert jnp.allclose(loss5, ref5, rtol=1e-3, atol=1e-3), (loss5, ref5)

    jax.block_until_ready((loss, loss2, loss3, loss4, loss5))
    print("KERNEL_OK")
</pallas_src>

<mosaic_0001>
module attributes {stable_mosaic.version = 11 : i64} {
  func.func @_sse_kernel(%arg0: i32, %arg1: i32, %arg2: memref<16x128xf32, #tpu.memory_space<vmem>>, %arg3: memref<16x128xf32, #tpu.memory_space<vmem>>, %arg4: memref<1x1xf32, #tpu.memory_space<smem>>, %arg5: memref<16x128xf32, #tpu.memory_space<vmem>>) attributes {dimension_semantics = [#tpu.dimension_semantics<parallel>, #tpu.dimension_semantics<arbitrary>], iteration_bounds = array<i64: 1, 1>, scalar_prefetch = 0 : i64, scratch_operands = 1 : i64, tpu.core_type = #tpu.core_type<tc>, window_params = [{transform_indices = @transform_0, window_bounds = array<i64: 16, 128>}, {transform_indices = @transform_1, window_bounds = array<i64: 16, 128>}, {transform_indices = @transform_2, window_bounds = array<i64: 1, 1>}]} {
    %c0_i32 = arith.constant 0 : i32
    %0 = arith.cmpi eq, %arg1, %c0_i32 : i32
    %1 = arith.extui %0 : i1 to i32
    %c0_i32_0 = arith.constant 0 : i32
    %2 = arith.cmpi ne, %1, %c0_i32_0 : i32
    scf.if %2 {
      %cst = arith.constant 0.000000e+00 : f32
      %13 = vector.broadcast %cst : f32 to vector<16x128xf32>
      %c0_10 = arith.constant 0 : index
      %c0_11 = arith.constant 0 : index
      %14 = vector.load %arg5[%c0_10, %c0_11] : memref<16x128xf32, #tpu.memory_space<vmem>>, vector<16x128xf32>
      tpu.vector_store %arg5[%c0_10, %c0_11], %13 {strides = array<i32>} : memref<16x128xf32, #tpu.memory_space<vmem>>, vector<16x128xf32>,
    } else {
    }
    %c0 = arith.constant 0 : index
    %c0_1 = arith.constant 0 : index
    %3 = vector.load %arg2[%c0, %c0_1] : memref<16x128xf32, #tpu.memory_space<vmem>>, vector<16x128xf32>
    %c0_2 = arith.constant 0 : index
    %c0_3 = arith.constant 0 : index
    %4 = vector.load %arg3[%c0_2, %c0_3] : memref<16x128xf32, #tpu.memory_space<vmem>>, vector<16x128xf32>
    %5 = arith.subf %3, %4 : vector<16x128xf32>
    %c0_4 = arith.constant 0 : index
    %c0_5 = arith.constant 0 : index
    %6 = vector.load %arg5[%c0_4, %c0_5] : memref<16x128xf32, #tpu.memory_space<vmem>>, vector<16x128xf32>
    %7 = arith.mulf %5, %5 : vector<16x128xf32>
    %8 = arith.addf %6, %7 : vector<16x128xf32>
    %c0_6 = arith.constant 0 : index
    %c0_7 = arith.constant 0 : index
    %9 = vector.load %arg5[%c0_6, %c0_7] : memref<16x128xf32, #tpu.memory_space<vmem>>, vector<16x128xf32>
    tpu.vector_store %arg5[%c0_6, %c0_7], %8 {strides = array<i32>} : memref<16x128xf32, #tpu.memory_space<vmem>>, vector<16x128xf32>,
    %c0_i32_8 = arith.constant 0 : i32
    %10 = arith.cmpi eq, %arg1, %c0_i32_8 : i32
    %11 = arith.extui %10 : i1 to i32
    %c0_i32_9 = arith.constant 0 : i32
    %12 = arith.cmpi ne, %11, %c0_i32_9 : i32
    scf.if %12 {
      %c0_10 = arith.constant 0 : index
      %c0_11 = arith.constant 0 : index
      %13 = vector.load %arg5[%c0_10, %c0_11] : memref<16x128xf32, #tpu.memory_space<vmem>>, vector<16x128xf32>
      %14 = vector.shape_cast %13 : vector<16x128xf32> to vector<1x16x128xf32>
      %cst = arith.constant dense<0.000000e+00> : vector<1xf32>
      %15 = vector.multi_reduction <add>, %14, %cst [1, 2] : vector<1x16x128xf32> to vector<1xf32>
      %16 = vector.shape_cast %15 : vector<1xf32> to vector<1x1x1xf32>
      %17 = vector.extract %16[0, 0, 0] : f32 from vector<1x1x1xf32>
      %c0_12 = arith.constant 0 : index
      %c0_13 = arith.constant 0 : index
      %18 = memref.load %arg4[%c0_12, %c0_13] : memref<1x1xf32, #tpu.memory_space<smem>>
      memref.store %17, %arg4[%c0_12, %c0_13] : memref<1x1xf32, #tpu.memory_space<smem>>
    } else {
    }
    return
  }
  func.func @transform_0(%arg0: i32, %arg1: i32) -> (i32, i32) {
    %c1_i32 = arith.constant 1 : i32
    %0 = arith.muli %arg0, %c1_i32 : i32
    %1 = arith.addi %0, %arg1 : i32
    %c0_i32 = arith.constant 0 : i32
    %c0_i32_0 = arith.constant 0 : i32
    return %1, %c0_i32 : i32, i32
  }
  func.func @transform_1(%arg0: i32, %arg1: i32) -> (i32, i32) {
    %c1_i32 = arith.constant 1 : i32
    %0 = arith.muli %arg0, %c1_i32 : i32
    %1 = arith.addi %0, %arg1 : i32
    %c0_i32 = arith.constant 0 : i32
    %c0_i32_0 = arith.constant 0 : i32
    return %1, %c0_i32 : i32, i32
  }
  func.func @transform_2(%arg0: i32, %arg1: i32) -> (i32, i32) {
    %c0_i32 = arith.constant 0 : i32
    %c0_i32_0 = arith.constant 0 : i32
    return %arg0, %c0_i32 : i32, i32
  }
}

</mosaic_0001>

<llo_original>
// kernel: recons_loss.1
$region0: #{recons_loss.1}
  #allocation0 [shape = 'u32[]', space=smem, size = 0x4, offset = 0x4, fixed_abs, tag = 'smem constant byte address 0x4 - core index']
  #allocation1 [shape = 'u32[144,128]{1,0:T(1,128)}', space=vmem, size = 0x12000, scoped, tag = 'internal scratch']
  #allocation2 [shape = 'f32[16,128]{1,0:T(8,128)}', space=vmem, size = 0x2000, scoped, tag = 'scratch operand']
  %s0 = inlined_call_operand.vmem [shape: f32[16,128], index: 0, kind: input, shape index: {}]
  %s1 = inlined_call_operand.vmem [shape: f32[16,128], index: 1, kind: input, shape index: {}]
  %s2 = inlined_call_operand.hbm [shape: f32[1,1], index: 2, kind: output, shape index: {}]
  %s3 = sld [smem:[#allocation0]]
  $region26: #{recons_loss.1} parent=0
    _
  %s5 = ssub.s32 1, %s3
  %s6 = scalar_select 0, %s5, %s3
  $region1: #{recons_loss.1} parent=0
    #allocation3 [shape = 'u8[512]{0}', space=smem, size = 0x200, scoped, tag = 'output window, operand 0, single buffered']
    #allocation4 [shape = 's32[1]{0}', space=sflag, size = 0x4, scoped, tag = 'scoped memory for recons_loss.1']
    %7 = vsyncpa [#allocation4], 0
    // Predicated region
    $region2: #{recons_loss.1} parent=1 // pred_check
      _
    $region3: #{recons_loss.1} parent=1 // pred_check_branch
      %9 = sbr.rel (0) target = $region5
    $region4: #{recons_loss.1} parent=1 // pred_region
      %s10 = sadd.s32 0, 0
      %s11 = smul.u32 2, %s10
      %p12 = scmp.lt.s32.totalorder %s11, 1
      %s13 = scalar_select %p12, %s11, 1
      %s14 = smul.addr %s13, 8
      %s15 = scalar_lea.vmem %s0, %s14
      %s16 = sadd.s32 0, 0
      %s17 = smul.u32 2, %s16
    $region5: #{recons_loss.1} parent=1 // pred_fallthru
      _
    // Predicated region
    $region6: #{recons_loss.1} parent=1 // pred_check
      _
    $region7: #{recons_loss.1} parent=1 // pred_check_branch
      %19 = sbr.rel (0) target = $region9
    $region8: #{recons_loss.1} parent=1 // pred_region
      %s20 = sadd.s32 0, 0
      %s21 = smul.u32 2, %s20
      %p22 = scmp.lt.s32.totalorder %s21, 1
      %s23 = scalar_select %p22, %s21, 1
      %s24 = smul.addr %s23, 8
      %s25 = scalar_lea.vmem %s1, %s24
      %s26 = sadd.s32 0, 0
      %s27 = smul.u32 2, %s26
    $region9: #{recons_loss.1} parent=1 // pred_fallthru
      _
    %s28 = sadd.s32 0, 0
    %s29 = smul.u32 2, %s28
    %p30 = scmp.lt.s32.totalorder %s29, 1
    %s31 = scalar_select %p30, %s29, 1
    %s32 = smul.addr %s31, 8
    %s33 = scalar_lea.vmem %s0, %s32
    %s34 = sadd.s32 0, 0
    %s35 = smul.u32 2, %s34
    %p36 = scmp.lt.s32.totalorder %s35, 1
    %s37 = scalar_select %p36, %s35, 1
    %s38 = smul.addr %s37, 8
    %s39 = scalar_lea.vmem %s1, %s38
    %s40 = sadd.s32 0, 0
    %s41 = smul.u32 2, %s40
    %p42 = scmp.lt.s32.totalorder %s41, 1
    %s43 = scalar_select %p42, %s41, 1
    %s44 = smul.addr %s43, 8
    %s45 = scalar_lea.vmem %s0, %s44
    %s46 = sadd.s32 0, 0
    %s47 = smul.u32 2, %s46
    %s48 = sadd.s32 0, 0
    %s49 = smul.u32 2, %s48
    %p50 = scmp.lt.s32.totalorder %s49, 1
    %s51 = scalar_select %p50, %s49, 1
    %s52 = smul.addr %s51, 8
    %s53 = scalar_lea.vmem %s1, %s52
    %s54 = sadd.s32 0, 0
    %s55 = smul.u32 2, %s54
    %p56 = scmp.eq.s32.totalorder 0, 0
    // Predicated region
    $region10: #{recons_loss.1} parent=1 // pred_check
      %p57 = pneg %p56
    $region11: #{recons_loss.1} parent=1 // pred_check_branch
      %59 = sbr.rel (%p57) target = $region13
    $region12: #{recons_loss.1} parent=1 // pred_region
      %60 = vst [vmem:[#allocation2] sm:$0xff] 0.0
      %61 = vst [vmem:[#allocation2 + $0x8] sm:$0xff] 0.0
    $region13: #{recons_loss.1} parent=1 // pred_fallthru
      _
    %v62 = vld [vmem:[%s45] sm:$0xff]
    %v63 = vld [vmem:[%s45 + $0x8] sm:$0xff]
    %v64 = vld [vmem:[%s53] sm:$0xff]
    %v65 = vld [vmem:[%s53 + $0x8] sm:$0xff]
    %v66 = vsub.f32 %v62, %v64
    %v67 = vsub.f32 %v63, %v65
    %v68 = vld [vmem:[#allocation2] sm:$0xff]
    %v69 = vld [vmem:[#allocation2 + $0x8] sm:$0xff]
    %v70 = vmul.f32 %v66, %v66
    %v71 = vmul.f32 %v67, %v67
    %v72 = vadd.f32 %v68, %v70
    %v73 = vadd.f32 %v69, %v71
    %74 = vst [vmem:[#allocation2] sm:$0xff] %v72
    %75 = vst [vmem:[#allocation2 + $0x8] sm:$0xff] %v73
    // Predicated region
    $region14: #{recons_loss.1} parent=1 // pred_check
      %p76 = pneg %p56
    $region15: #{recons_loss.1} parent=1 // pred_check_branch
      %78 = sbr.rel (%p76) target = $region17
    $region16: #{recons_loss.1} parent=1 // pred_region
      %v79 = vld [vmem:[#allocation2] sm:$0xff]
      %v80 = vld [vmem:[#allocation2 + $0x8] sm:$0xff]
      %v81 = vadd.f32 %v79, %v80
      %82 = vadd.xlane.f32.xlu0 %v81
      %v83 = vpop.xlane.xlu0 %82
      %v84 = vrot.slane %v83, 4
      %v85 = vadd.f32 %v83, %v84
      %v86 = vrot.slane %v85, 2
      %v87 = vadd.f32 %v85, %v86
      %v88 = vrot.slane %v87, 1
      %v89 = vadd.f32 %v87, %v88
      %s90 = vtos %v89
      %s91 = scalar_lea.smem [#allocation3], 0
      %92 = sst [smem:[%s91]] %s90
    $region17: #{recons_loss.1} parent=1 // pred_fallthru
      _
    // Predicated region
    $region18: #{recons_loss.1} parent=1 // pred_check
      _
    $region19: #{recons_loss.1} parent=1 // pred_check_branch
      %94 = sbr.rel (0) target = $region21
    $region20: #{recons_loss.1} parent=1 // pred_region
      %s96 = ssub.s32 16, 16
      %97 = vsyncadd [#allocation4], %s96
      %100 = dma.smem_to_hbm [#allocation3], 16, %s2, [#allocation4]
    $region21: #{recons_loss.1} parent=1 // pred_fallthru
      _
    // Predicated region
    $region22: #{recons_loss.1} parent=1 // pred_check
      _
    $region23: #{recons_loss.1} parent=1 // pred_check_branch
      %102 = sbr.rel (0) target = $region25
    $region24: #{recons_loss.1} parent=1 // pred_region
      %103 = dma.done [#allocation4], 16
    $region25: #{recons_loss.1} parent=1 // pred_fallthru
      _
    %104 = sfence
    %105 = vsyncpa [#allocation4], 1

</llo_original>
